<compile_context>
chip_gen: v6e
topology: v6e:2x2x1
jax: 0.10.0
libtpu: 0.0.40
codegen_flags: <defaults>
</compile_context>

<pallas_src>
import functools

import jax
import jax.numpy as jnp
from jax import lax
from jax.experimental import pallas as pl
from jax.experimental.pallas import tpu as pltpu

EPS = 1e-5                  # nn.LayerNorm default eps
MAX_TILE_ROWS = 512         # pipelining returns saturate around 512-1024 rows
MAX_FUSED_TILES = 256       # finalize rescale loop is unrolled; bound the unroll


# ----------------------------- planning helpers ----------------------------- #

def _round_up(v, m):
    return ((v + m - 1) // m) * m


def _vmem_caps():
    """Chip-derived VMEM limit (CompilerParams) and working-set budget."""
    cap = 64 * 1024 * 1024                      # conservative default = v7x per-core VMEM
    try:
        cap = int(pltpu.get_tpu_info().vmem_capacity_bytes)
    except Exception:
        pass
    limit = min(int(cap * 0.75), cap - (4 << 20))
    budget = int(cap * 0.45)
    return limit, budget


def _plan(n_tokens, hidden, n_classes, w_bytes, budget,
          force_tile_rows=None, force_two_pass=False):
    """Pick the token tile (always a multiple of 8), padded token count and path."""
    n_ceil8 = _round_up(n_tokens, 8)
    if force_tile_rows is not None:
        tn = min(n_ceil8, _round_up(max(1, force_tile_rows), 8))
    else:
        # Double-buffered f32 x tile + a few (row, C) f32 temporaries per row.
        per_row = 2 * hidden * 4 + 8 * n_classes * 4
        tn_fit = max(8, ((budget // 2) // max(per_row, 1)) // 8 * 8)
        tn = min(MAX_TILE_ROWS, n_ceil8, tn_fit)
    n_pad = _round_up(n_tokens, tn)
    n_tiles = n_pad // tn

    resident = 2 * n_pad * n_classes * 4                  # double-buffered output block
    working = (2 * tn * hidden * 4                        # x tiles (double-buffered f32)
               + 2 * hidden * n_classes * w_bytes         # folded weights
               + 8 * tn * n_classes * 4                   # logits / p temporaries
               + 4 * (n_tiles + 4) * n_classes * 4)       # stats scratch
    fused = ((not force_two_pass)
             and n_tiles <= MAX_FUSED_TILES
             and resident + working <= budget)
    return tn, n_pad, n_tiles, fused


# --------------------------------- kernels ---------------------------------- #

def _fused_kernel(x_ref, w_ref, b_ref, o_ref, m_ref, l_ref, mt_ref, *,
                  tn, n_tiles, n_valid):
    """Per (batch, token-tile): LayerNorm -> Linear -> online softmax over tokens.
    p = exp(logit - running_max) is written into the per-batch VMEM-resident output
    block; the last tile rescales the whole block in place (no HBM round trip)."""
    ni = pl.program_id(1)

    # LayerNorm over hidden (f32); affine (gamma, beta) folded into W'/b' on host.
    x = x_ref[0].astype(jnp.float32)                       # (tn, H)
    mean = jnp.mean(x, axis=-1, keepdims=True)
    xc = x - mean
    var = jnp.mean(xc * xc, axis=-1, keepdims=True)
    xn = xc * lax.rsqrt(var + EPS)

    # Linear: (tn, H) @ (H, C) + (1, C); MXU in matmul_dtype, f32 accumulate.
    logits = jnp.dot(xn.astype(w_ref.dtype), w_ref[...],
                     preferred_element_type=jnp.float32) + b_ref[...]

    if n_valid is not None:                                # mask zero-padded token rows
        rows = ni * tn + lax.broadcasted_iota(jnp.int32, (tn, 1), 0)
        logits = jnp.where(rows < n_valid, logits, -jnp.inf)

    tile_max = jnp.max(logits, axis=0, keepdims=True)      # (1, C)

    @pl.when(ni == 0)
    def _init():
        m_ref[...] = jnp.full_like(m_ref, -jnp.inf)
        l_ref[...] = jnp.zeros_like(l_ref)

    m_old = m_ref[...]
    m_new = jnp.maximum(m_old, tile_max)
    p = jnp.exp(logits - m_new)                            # one exp per logit (EUP)
    l_ref[...] = l_ref[...] * jnp.exp(m_old - m_new) + jnp.sum(p, axis=0, keepdims=True)
    m_ref[...] = m_new
    mt_ref[pl.ds(ni, 1), :] = m_new                        # per-tile max snapshot

    row0 = pl.multiple_of(ni * tn, 8)
    o_ref[0, pl.ds(row0, tn), :] = p.astype(o_ref.dtype)

    @pl.when(ni == n_tiles - 1)
    def _finalize():
        denom = l_ref[...]
        r = pl.reciprocal(denom, approx=True)              # EUP approx + 1 Newton step
        inv_l = r * (2.0 - denom * r)
        scales = jnp.exp(mt_ref[...] - m_ref[...]) * inv_l  # (n_tiles, C)
        for t in range(n_tiles):                            # pure VPU rescale, in VMEM
            sl = pl.ds(t * tn, tn)
            o_ref[0, sl, :] = o_ref[0, sl, :] * scales[t:t + 1, :]


def _stats_logits_kernel(x_ref, w_ref, b_ref, logits_ref, m_ref, invl_ref, *,
                         tn, n_valid):
    """Fallback pass 1 (huge N): bf16 logits + online softmax stats over tokens."""
    ni = pl.program_id(1)

    x = x_ref[0].astype(jnp.float32)
    mean = jnp.mean(x, axis=-1, keepdims=True)
    xc = x - mean
    var = jnp.mean(xc * xc, axis=-1, keepdims=True)
    xn = xc * lax.rsqrt(var + EPS)

    logits = jnp.dot(xn.astype(w_ref.dtype), w_ref[...],
                     preferred_element_type=jnp.float32) + b_ref[...]

    if n_valid is not None:
        rows = ni * tn + lax.broadcasted_iota(jnp.int32, (tn, 1), 0)
        logits = jnp.where(rows < n_valid, logits, -jnp.inf)

    logits_ref[0] = logits.astype(logits_ref.dtype)        # bf16 halves HBM round trip

    tile_max = jnp.max(logits, axis=0, keepdims=True)

    @pl.when(ni == 0)
    def _init():
        m_ref[0] = jnp.full_like(m_ref[0], -jnp.inf)
        invl_ref[0] = jnp.zeros_like(invl_ref[0])

    m_old = m_ref[0]
    m_new = jnp.maximum(m_old, tile_max)
    invl_ref[0] = (invl_ref[0] * jnp.exp(m_old - m_new)
                   + jnp.sum(jnp.exp(logits - m_new), axis=0, keepdims=True))
    m_ref[0] = m_new

    @pl.when(ni == pl.num_programs(1) - 1)
    def _finalize():
        denom = invl_ref[0]
        r = pl.reciprocal(denom, approx=True)
        invl_ref[0] = r * (2.0 - denom * r)


def _normalize_kernel(logits_ref, m_ref, invl_ref, o_ref):
    """Fallback pass 2: out = exp(logits - m) * (1 / sum_exp)."""
    p = jnp.exp(logits_ref[0].astype(jnp.float32) - m_ref[0])
    o_ref[0] = (p * invl_ref[0]).astype(o_ref.dtype)


# --------------------------------- wrapper ----------------------------------- #

def semantic_segmentation_predictor(x, gamma, beta, w, b, *,
                                    matmul_dtype=jnp.bfloat16,
                                    force_tile_rows=None,
                                    force_two_pass=False):
    """x: (B, N, H); gamma/beta: (H,) LayerNorm affine; w: (C, H) (nn.Linear layout);
    b: (C,).  Returns softmax-over-tokens probabilities (B, N, C).

    matmul_dtype=bfloat16 (default) uses the bf16 MXU path on v5e/v6e/v7x; pass
    jnp.float32 for tight agreement with an f32 reference."""
    B, N, H = x.shape
    C = w.shape[0]
    vmem_limit, budget = _vmem_caps()
    w_bytes = jnp.dtype(matmul_dtype).itemsize

    # Fold the LayerNorm affine into the Linear (one-time host precompute):
    #   (xn*gamma + beta) @ W^T + b == xn @ (gamma[:,None]*W^T) + (beta @ W^T + b)
    w_t = jnp.transpose(w).astype(jnp.float32)                       # (H, C)
    w_fold = (gamma.astype(jnp.float32)[:, None] * w_t).astype(matmul_dtype)
    b_fold = (b.astype(jnp.float32) + beta.astype(jnp.float32) @ w_t)[None, :]  # (1, C)

    tn, n_pad, n_tiles, fused = _plan(N, H, C, w_bytes, budget,
                                      force_tile_rows=force_tile_rows,
                                      force_two_pass=force_two_pass)
    n_valid = None if n_pad == N else N
    x_in = x if n_pad == N else jnp.pad(x, ((0, 0), (0, n_pad - N), (0, 0)))

    x_spec = pl.BlockSpec((1, tn, H), lambda bi, ni: (bi, ni, 0))
    w_spec = pl.BlockSpec((H, C), lambda bi, ni: (0, 0))       # constant -> fetched once
    b_spec = pl.BlockSpec((1, C), lambda bi, ni: (0, 0))
    # TODO(synk): single-buffer the constant W'/b' blocks (pipeline_mode=pl.Buffered(1))
    # if VMEM ever becomes the limiter; segmentation-head weights are small so the extra
    # buffer is negligible today.

    if fused:
        out_pad = pl.pallas_call(
            functools.partial(_fused_kernel, tn=tn, n_tiles=n_tiles, n_valid=n_valid),
            out_shape=jax.ShapeDtypeStruct((B, n_pad, C), jnp.float32),
            grid_spec=pltpu.PrefetchScalarGridSpec(
                num_scalar_prefetch=0,
                grid=(B, n_tiles),
                in_specs=[x_spec, w_spec, b_spec],
                out_specs=pl.BlockSpec((1, n_pad, C), lambda bi, ni: (bi, 0, 0)),
                scratch_shapes=[pltpu.VMEM((1, C), jnp.float32),        # running max
                                pltpu.VMEM((1, C), jnp.float32),        # running sum-exp
                                pltpu.VMEM((n_tiles, C), jnp.float32)], # per-tile max
            ),
            compiler_params=pltpu.CompilerParams(
                dimension_semantics=("parallel", "arbitrary"),
                vmem_limit_bytes=vmem_limit),
        )(x_in, w_fold, b_fold)
    else:
        # Two-pass fallback for token counts whose per-batch (N, C) block does not fit
        # VMEM: bf16 intermediate logits halve the dominant HBM round trip.
        logits_spec = pl.BlockSpec((1, tn, C), lambda bi, ni: (bi, ni, 0))
        stats_spec = pl.BlockSpec((1, 1, C), lambda bi, ni: (bi, 0, 0))

        logits, m, inv_l = pl.pallas_call(
            functools.partial(_stats_logits_kernel, tn=tn, n_valid=n_valid),
            out_shape=(jax.ShapeDtypeStruct((B, n_pad, C), jnp.bfloat16),
                       jax.ShapeDtypeStruct((B, 1, C), jnp.float32),
                       jax.ShapeDtypeStruct((B, 1, C), jnp.float32)),
            grid_spec=pltpu.PrefetchScalarGridSpec(
                num_scalar_prefetch=0,
                grid=(B, n_tiles),
                in_specs=[x_spec, w_spec, b_spec],
                out_specs=(logits_spec, stats_spec, stats_spec),
            ),
            compiler_params=pltpu.CompilerParams(
                dimension_semantics=("parallel", "arbitrary"),
                vmem_limit_bytes=vmem_limit),
        )(x_in, w_fold, b_fold)

        out_pad = pl.pallas_call(
            _normalize_kernel,
            out_shape=jax.ShapeDtypeStruct((B, n_pad, C), jnp.float32),
            grid_spec=pltpu.PrefetchScalarGridSpec(
                num_scalar_prefetch=0,
                grid=(B, n_tiles),
                in_specs=[logits_spec, stats_spec, stats_spec],
                out_specs=logits_spec,
            ),
            compiler_params=pltpu.CompilerParams(
                dimension_semantics=("parallel", "parallel"),
                vmem_limit_bytes=vmem_limit),
        )(logits, m, inv_l)

    # TODO(synk): for B == 1 on v7x, split the token-tile axis across the two TensorCores
    # (per-core partial (m, l) stats combined in a tiny epilogue) for megacore coverage.
    return out_pad if n_pad == N else out_pad[:, :N, :]


# ----------------------------- reference & demo ------------------------------ #

def reference(x, gamma, beta, w, b):
    mean = jnp.mean(x, axis=-1, keepdims=True)
    var = jnp.mean(jnp.square(x - mean), axis=-1, keepdims=True)
    xn = (x - mean) / jnp.sqrt(var + EPS) * gamma + beta
    logits = jnp.einsum("bnh,ch->bnc", xn, w) + b
    return jax.nn.softmax(logits, axis=1)   # dim=1 == token axis


if __name__ == "__main__":
    B, N, H, C = 2, 8, 32, 4   # batch, tokens, hidden_dim, num_classes

    key = jax.random.PRNGKey(0)
    kx, kw, kb, kg, kbe, kx2 = jax.random.split(key, 6)

    x = jax.random.normal(kx, (B, N, H), dtype=jnp.float32)
    gamma = 1.0 + 0.1 * jax.random.normal(kg, (H,), dtype=jnp.float32)   # LN weight
    beta = 0.05 * jax.random.normal(kbe, (H,), dtype=jnp.float32)        # LN bias
    w = jax.random.normal(kw, (C, H), dtype=jnp.float32) * (1.0 / jnp.sqrt(H))
    b = jax.random.normal(kb, (C,), dtype=jnp.float32) * 0.01

    ref = reference(x, gamma, beta, w, b)

    # 1) fused single-pass path, f32 matmul (tight check vs the f32 reference).
    out = jax.block_until_ready(
        semantic_segmentation_predictor(x, gamma, beta, w, b, matmul_dtype=jnp.float32))
    assert out.shape == (B, N, C)
    assert jnp.allclose(out, ref, atol=2e-5, rtol=1e-4), "fused f32 path mismatch"

    # 2) fused path with default bf16 weights / MXU matmul (looser tolerance).
    out_bf16 = jax.block_until_ready(
        semantic_segmentation_predictor(x, gamma, beta, w, b))
    assert jnp.allclose(out_bf16, ref, atol=3e-2, rtol=5e-2), "fused bf16 path mismatch"

    # 3) multi-tile online softmax + token padding/masking (N=20 forced onto 8-row tiles).
    N2 = 20
    x2 = jax.random.normal(kx2, (B, N2, H), dtype=jnp.float32)
    ref2 = reference(x2, gamma, beta, w, b)
    out2 = jax.block_until_ready(
        semantic_segmentation_predictor(x2, gamma, beta, w, b,
                                        matmul_dtype=jnp.float32, force_tile_rows=8))
    assert out2.shape == (B, N2, C)
    assert jnp.allclose(out2, ref2, atol=2e-5, rtol=1e-4), "tiled/masked path mismatch"

    # 4) two-pass fallback path (bf16 intermediate logits), forced.
    out3 = jax.block_until_ready(
        semantic_segmentation_predictor(x2, gamma, beta, w, b,
                                        matmul_dtype=jnp.float32,
                                        force_tile_rows=8, force_two_pass=True))
    assert jnp.allclose(out3, ref2, atol=2e-2, rtol=5e-2), "two-pass fallback mismatch"

    print("KERNEL_OK")
</pallas_src>

<mosaic_0001>
module attributes {stable_mosaic.version = 11 : i64} {
  func.func @_fused_kernel(%arg0: i32, %arg1: i32, %arg2: memref<1x8x32xf32, #tpu.memory_space<vmem>>, %arg3: memref<32x4xf32, #tpu.memory_space<vmem>>, %arg4: memref<1x4xf32, #tpu.memory_space<vmem>>, %arg5: memref<1x8x4xf32, #tpu.memory_space<vmem>>, %arg6: memref<1x4xf32, #tpu.memory_space<vmem>>, %arg7: memref<1x4xf32, #tpu.memory_space<vmem>>, %arg8: memref<1x4xf32, #tpu.memory_space<vmem>>) attributes {dimension_semantics = [#tpu.dimension_semantics<parallel>, #tpu.dimension_semantics<arbitrary>], iteration_bounds = array<i64: 2, 1>, scalar_prefetch = 0 : i64, scratch_operands = 3 : i64, tpu.core_type = #tpu.core_type<tc>, window_params = [{transform_indices = @transform_0, window_bounds = array<i64: 1, 8, 32>}, {pipeline_mode = #tpu.pipeline_mode<synchronous>, transform_indices = @transform_1, window_bounds = array<i64: 32, 4>}, {pipeline_mode = #tpu.pipeline_mode<synchronous>, transform_indices = @transform_2, window_bounds = array<i64: 1, 4>}, {transform_indices = @transform_3, window_bounds = array<i64: 1, 8, 4>}]} {
    %c0 = arith.constant 0 : index
    %c0_0 = arith.constant 0 : index
    %c0_1 = arith.constant 0 : index
    %0 = vector.load %arg2[%c0, %c0_0, %c0_1] : memref<1x8x32xf32, #tpu.memory_space<vmem>>, vector<1x8x32xf32>
    %1 = vector.shape_cast %0 : vector<1x8x32xf32> to vector<8x32xf32>
    %cst = arith.constant dense<0.000000e+00> : vector<8xf32>
    %2 = vector.multi_reduction <add>, %1, %cst [1] : vector<8x32xf32> to vector<8xf32>
    %3 = vector.shape_cast %2 : vector<8xf32> to vector<8x1xf32>
    %cst_2 = arith.constant 3.200000e+01 : f32
    %4 = vector.broadcast %cst_2 : f32 to vector<8x1xf32>
    %5 = arith.divf %3, %4 : vector<8x1xf32>
    %6 = vector.broadcast %5 : vector<8x1xf32> to vector<8x32xf32>
    %7 = arith.subf %1, %6 : vector<8x32xf32>
    %8 = arith.mulf %7, %7 : vector<8x32xf32>
    %cst_3 = arith.constant dense<0.000000e+00> : vector<8xf32>
    %9 = vector.multi_reduction <add>, %8, %cst_3 [1] : vector<8x32xf32> to vector<8xf32>
    %10 = vector.shape_cast %9 : vector<8xf32> to vector<8x1xf32>
    %cst_4 = arith.constant 3.200000e+01 : f32
    %11 = vector.broadcast %cst_4 : f32 to vector<8x1xf32>
    %12 = arith.divf %10, %11 : vector<8x1xf32>
    %cst_5 = arith.constant 9.99999974E-6 : f32
    %13 = vector.broadcast %cst_5 : f32 to vector<8x1xf32>
    %14 = arith.addf %12, %13 : vector<8x1xf32>
    %15 = math.rsqrt %14 : vector<8x1xf32>
    %16 = vector.broadcast %15 : vector<8x1xf32> to vector<8x32xf32>
    %17 = arith.mulf %7, %16 : vector<8x32xf32>
    %c0_6 = arith.constant 0 : index
    %c0_7 = arith.constant 0 : index
    %18 = vector.load %arg3[%c0_6, %c0_7] : memref<32x4xf32, #tpu.memory_space<vmem>>, vector<32x4xf32>
    %cst_8 = arith.constant dense<0.000000e+00> : vector<8x4xf32>
    %19 = tpu.matmul %17, %18, %cst_8 {dimension_numbers = #tpu.dot_dimension_numbers<[1], [0], [0], [1], [0, 0, 1, 1], [], []>} : vector<8x32xf32>, vector<32x4xf32>, vector<8x4xf32> -> vector<8x4xf32>
    %c0_9 = arith.constant 0 : index
    %c0_10 = arith.constant 0 : index
    %20 = vector.load %arg4[%c0_9, %c0_10] : memref<1x4xf32, #tpu.memory_space<vmem>>, vector<1x4xf32>
    %21 = vector.broadcast %20 : vector<1x4xf32> to vector<8x4xf32>
    %22 = arith.addf %19, %21 : vector<8x4xf32>
    %cst_11 = arith.constant dense<0xFF800000> : vector<4xf32>
    %23 = vector.multi_reduction <maximumf>, %22, %cst_11 [0] : vector<8x4xf32> to vector<4xf32>
    %24 = vector.shape_cast %23 : vector<4xf32> to vector<1x4xf32>
    %c0_i32 = arith.constant 0 : i32
    %25 = arith.cmpi eq, %arg1, %c0_i32 : i32
    %26 = arith.extui %25 : i1 to i32
    %c0_i32_12 = arith.constant 0 : i32
    %27 = arith.cmpi ne, %26, %c0_i32_12 : i32
    scf.if %27 {
      %cst_27 = arith.constant 0xFF800000 : f32
      %53 = vector.broadcast %cst_27 : f32 to vector<1x4xf32>
      %c0_28 = arith.constant 0 : index
      %c0_29 = arith.constant 0 : index
      %54 = vector.load %arg6[%c0_28, %c0_29] : memref<1x4xf32, #tpu.memory_space<vmem>>, vector<1x4xf32>
      tpu.vector_store %arg6[%c0_28, %c0_29], %53 {strides = array<i32>} : memref<1x4xf32, #tpu.memory_space<vmem>>, vector<1x4xf32>,
      %cst_30 = arith.constant 0.000000e+00 : f32
      %55 = vector.broadcast %cst_30 : f32 to vector<1x4xf32>
      %c0_31 = arith.constant 0 : index
      %c0_32 = arith.constant 0 : index
      %56 = vector.load %arg7[%c0_31, %c0_32] : memref<1x4xf32, #tpu.memory_space<vmem>>, vector<1x4xf32>
      tpu.vector_store %arg7[%c0_31, %c0_32], %55 {strides = array<i32>} : memref<1x4xf32, #tpu.memory_space<vmem>>, vector<1x4xf32>,
    } else {
    }
    %c0_13 = arith.constant 0 : index
    %c0_14 = arith.constant 0 : index
    %28 = vector.load %arg6[%c0_13, %c0_14] : memref<1x4xf32, #tpu.memory_space<vmem>>, vector<1x4xf32>
    %29 = arith.maximumf %28, %24 : vector<1x4xf32>
    %30 = vector.broadcast %29 : vector<1x4xf32> to vector<8x4xf32>
    %31 = arith.subf %22, %30 : vector<8x4xf32>
    %32 = math.exp %31 : vector<8x4xf32>
    %c0_15 = arith.constant 0 : index
    %c0_16 = arith.constant 0 : index
    %33 = vector.load %arg7[%c0_15, %c0_16] : memref<1x4xf32, #tpu.memory_space<vmem>>, vector<1x4xf32>
    %34 = arith.subf %28, %29 : vector<1x4xf32>
    %35 = math.exp %34 : vector<1x4xf32>
    %36 = arith.mulf %33, %35 : vector<1x4xf32>
    %cst_17 = arith.constant dense<0.000000e+00> : vector<4xf32>
    %37 = vector.multi_reduction <add>, %32, %cst_17 [0] : vector<8x4xf32> to vector<4xf32>
    %38 = vector.shape_cast %37 : vector<4xf32> to vector<1x4xf32>
    %39 = arith.addf %36, %38 : vector<1x4xf32>
    %c0_18 = arith.constant 0 : index
    %c0_19 = arith.constant 0 : index
    %40 = vector.load %arg7[%c0_18, %c0_19] : memref<1x4xf32, #tpu.memory_space<vmem>>, vector<1x4xf32>
    tpu.vector_store %arg7[%c0_18, %c0_19], %39 {strides = array<i32>} : memref<1x4xf32, #tpu.memory_space<vmem>>, vector<1x4xf32>,
    %c0_20 = arith.constant 0 : index
    %c0_21 = arith.constant 0 : index
    %41 = vector.load %arg6[%c0_20, %c0_21] : memref<1x4xf32, #tpu.memory_space<vmem>>, vector<1x4xf32>
    tpu.vector_store %arg6[%c0_20, %c0_21], %29 {strides = array<i32>} : memref<1x4xf32, #tpu.memory_space<vmem>>, vector<1x4xf32>,
    %42 = arith.index_cast %arg1 : i32 to index
    %c0_22 = arith.constant 0 : index
    %43 = vector.load %arg8[%42, %c0_22] : memref<1x4xf32, #tpu.memory_space<vmem>>, vector<1x4xf32>
    tpu.vector_store %arg8[%42, %c0_22], %29 {strides = array<i32>} : memref<1x4xf32, #tpu.memory_space<vmem>>, vector<1x4xf32>,
    %c8_i32 = arith.constant 8 : i32
    %44 = arith.muli %arg1, %c8_i32 : i32
    %45 = tpu.assume_multiple %44, 8 : i32
    %c0_23 = arith.constant 0 : index
    %46 = arith.index_cast %45 : i32 to index
    %c0_24 = arith.constant 0 : index
    %47 = vector.load %arg5[%c0_23, %46, %c0_24] : memref<1x8x4xf32, #tpu.memory_space<vmem>>, vector<1x8x4xf32>
    %48 = vector.shape_cast %47 : vector<1x8x4xf32> to vector<8x4xf32>
    %49 = vector.shape_cast %32 : vector<8x4xf32> to vector<1x8x4xf32>
    tpu.vector_store %arg5[%c0_23, %46, %c0_24], %49 {strides = array<i32>} : memref<1x8x4xf32, #tpu.memory_space<vmem>>, vector<1x8x4xf32>,
    %c0_i32_25 = arith.constant 0 : i32
    %50 = arith.cmpi eq, %arg1, %c0_i32_25 : i32
    %51 = arith.extui %50 : i1 to i32
    %c0_i32_26 = arith.constant 0 : i32
    %52 = arith.cmpi ne, %51, %c0_i32_26 : i32
    scf.if %52 {
      %c0_27 = arith.constant 0 : index
      %c0_28 = arith.constant 0 : index
      %53 = vector.load %arg7[%c0_27, %c0_28] : memref<1x4xf32, #tpu.memory_space<vmem>>, vector<1x4xf32>
      %54 = tpu.reciprocal %53 {approx = true} : vector<1x4xf32> -> vector<1x4xf32>
      %55 = arith.mulf %53, %54 : vector<1x4xf32>
      %cst_29 = arith.constant 2.000000e+00 : f32
      %56 = vector.broadcast %cst_29 : f32 to vector<1x4xf32>
      %57 = arith.subf %56, %55 : vector<1x4xf32>
      %58 = arith.mulf %54, %57 : vector<1x4xf32>
      %c0_30 = arith.constant 0 : index
      %c0_31 = arith.constant 0 : index
      %59 = vector.load %arg8[%c0_30, %c0_31] : memref<1x4xf32, #tpu.memory_space<vmem>>, vector<1x4xf32>
      %c0_32 = arith.constant 0 : index
      %c0_33 = arith.constant 0 : index
      %60 = vector.load %arg6[%c0_32, %c0_33] : memref<1x4xf32, #tpu.memory_space<vmem>>, vector<1x4xf32>
      %61 = arith.subf %59, %60 : vector<1x4xf32>
      %62 = math.exp %61 : vector<1x4xf32>
      %63 = arith.mulf %62, %58 : vector<1x4xf32>
      %c0_34 = arith.constant 0 : index
      %c0_35 = arith.constant 0 : index
      %c0_36 = arith.constant 0 : index
      %64 = vector.load %arg5[%c0_34, %c0_35, %c0_36] : memref<1x8x4xf32, #tpu.memory_space<vmem>>, vector<1x8x4xf32>
      %65 = vector.shape_cast %64 : vector<1x8x4xf32> to vector<8x4xf32>
      %66 = vector.broadcast %63 : vector<1x4xf32> to vector<8x4xf32>
      %67 = arith.mulf %65, %66 : vector<8x4xf32>
      %c0_37 = arith.constant 0 : index
      %c0_38 = arith.constant 0 : index
      %c0_39 = arith.constant 0 : index
      %68 = vector.load %arg5[%c0_37, %c0_38, %c0_39] : memref<1x8x4xf32, #tpu.memory_space<vmem>>, vector<1x8x4xf32>
      %69 = vector.shape_cast %68 : vector<1x8x4xf32> to vector<8x4xf32>
      %70 = vector.shape_cast %67 : vector<8x4xf32> to vector<1x8x4xf32>
      tpu.vector_store %arg5[%c0_37, %c0_38, %c0_39], %70 {strides = array<i32>} : memref<1x8x4xf32, #tpu.memory_space<vmem>>, vector<1x8x4xf32>,
    } else {
    }
    return
  }
  func.func @transform_0(%arg0: i32, %arg1: i32) -> (i32, i32, i32) {
    %c0_i32 = arith.constant 0 : i32
    %c0_i32_0 = arith.constant 0 : i32
    return %arg0, %arg1, %c0_i32 : i32, i32, i32
  }
  func.func @transform_1(%arg0: i32, %arg1: i32) -> (i32, i32) {
    %c0_i32 = arith.constant 0 : i32
    %c0_i32_0 = arith.constant 0 : i32
    %c0_i32_1 = arith.constant 0 : i32
    return %c0_i32, %c0_i32_0 : i32, i32
  }
  func.func @transform_2(%arg0: i32, %arg1: i32) -> (i32, i32) {
    %c0_i32 = arith.constant 0 : i32
    %c0_i32_0 = arith.constant 0 : i32
    %c0_i32_1 = arith.constant 0 : i32
    return %c0_i32, %c0_i32_0 : i32, i32
  }
  func.func @transform_3(%arg0: i32, %arg1: i32) -> (i32, i32, i32) {
    %c0_i32 = arith.constant 0 : i32
    %c0_i32_0 = arith.constant 0 : i32
    %c0_i32_1 = arith.constant 0 : i32
    return %arg0, %c0_i32, %c0_i32_0 : i32, i32, i32
  }
}

</mosaic_0001>

<llo_original>
// kernel: tpu_custom_call.1
$region0: #{tpu_custom_call.1}
  #allocation0 [shape = 'u32[]', space=smem, size = 0x4, offset = 0x4, fixed_abs, tag = 'smem constant byte address 0x4 - core index']
  #allocation1 [shape = 'u32[144,128]{1,0:T(1,128)}', space=vmem, size = 0x12000, scoped, tag = 'internal scratch']
  #allocation2 [shape = 'f32[1,4]{1,0:T(1,128)}', space=vmem, size = 0x200, scoped, tag = 'scratch operand']
  #allocation3 [shape = 'f32[1,4]{1,0:T(1,128)}', space=vmem, size = 0x200, scoped, tag = 'scratch operand']
  #allocation4 [shape = 'f32[1,4]{1,0:T(1,128)}', space=vmem, size = 0x200, scoped, tag = 'scratch operand']
  %s0 = inlined_call_operand.vmem [shape: f32[2,8,32], index: 0, kind: input, shape index: {}]
  %s1 = inlined_call_operand.vmem [shape: f32[32,4], index: 1, kind: input, shape index: {}]
  %s2 = inlined_call_operand.vmem [shape: f32[1,4], index: 2, kind: input, shape index: {}]
  %s3 = inlined_call_operand.vmem [shape: f32[2,8,4], index: 3, kind: output, shape index: {}]
  %s4 = sld [smem:[#allocation0]]
  $region53: #{tpu_custom_call.1} parent=0
    _
  %s6 = ssub.s32 1, %s4
  %s7 = scalar_select 0, %s6, %s4
  loop: start=0, step=1, limit=4
  $region2: #{tpu_custom_call.1} parent=0 // loop_pre_header
    _
  $region3: #{tpu_custom_call.1} parent=0 // loop_header
    %s9 = sphi 0, %s13
    %p10 = scmp.ge.s32.totalorder %s9, 4
    %s16 = sphi 0, %s28
    %s17 = sphi 0, %s24
    %s18 = sphi 0, %s16
    %s19 = sphi 0, %s17
    %s20 = sphi 0, %s18
    %s21 = sphi 0, %s19
    %s33 = sphi 0, %s35
    %s36 = sphi 0, %s33
    %s37 = sphi 0, %s36
    %s53 = sphi 0, %s37
    %s57 = sphi 0, %s57
    %s59 = sphi 0, %s57
    %s60 = sphi 0, %s59
    %s74 = sphi 0, %s60
    %s78 = sphi 0, %s78
    %s80 = sphi 0, %s78
    %s81 = sphi 0, %s80
    %s95 = sphi 0, %s81
    %s101 = sphi 0, %s103
    %s104 = sphi 0, %s101
    %s105 = sphi 0, %s104
    %s121 = sphi 0, %s105
  $region4: #{tpu_custom_call.1} parent=0 // loop_header_branch
    %12 = sbr.rel (%p10) target = $region8
  $region5: #{tpu_custom_call.1} parent=0 // loop_body
    %s14 = ssub.s32 %s9, 1
    %s15 = ssub.s32 %s9, 2
    %s22 = sadd.s32 1, %s17
    %p23 = scmp.ge.s32.totalorder %s22, 1
    %s24 = scalar_select %p23, 0, %s22
    %s25 = sadd.s32 1, %s16
    %s26 = scalar_select %p23, %s25, %s16
    %p27 = scmp.ge.s32.totalorder %s26, 2
    %s28 = scalar_select %p27, 0, %s26
    %s29 = ssub.s32 %s16, %s28
    %s30 = ssub.s32 %s17, %s24
    %s31 = sor.u32 %s29, %s30
    %p32 = scmp.eq.s32.totalorder %s31, 0
    %s34 = sadd.s32 %s33, 1
    %s35 = scalar_select %p32, %s33, %s34
    %p38 = pneg %p32
    %p39 = scmp.eq.s32.totalorder %s9, 1
    %p40 = por %p38, %p39
    %p41 = scmp.ne.s32.totalorder %s33, %s36
    %p42 = scmp.eq.s32.totalorder %s9, 0
    %p43 = por %p41, %p42
    %p44 = scmp.ne.s32.totalorder %s33, %s36
    %p45 = scmp.eq.s32.totalorder %s14, 1
    %p46 = por %p44, %p45
    %p47 = scmp.ne.s32.totalorder %s36, %s37
    %p48 = scmp.eq.s32.totalorder %s14, 0
    %p49 = por %p47, %p48
    %p50 = scmp.ne.s32.totalorder %s36, %s37
    %p51 = scmp.eq.s32.totalorder %s15, 1
    %p52 = por %p50, %p51
    %p54 = scmp.ne.s32.totalorder %s37, %s53
    %p55 = scmp.eq.s32.totalorder %s15, 0
    %p56 = por %p54, %p55
    %s58 = sadd.s32 %s57, 1
    %p61 = scmp.eq.s32.totalorder %s9, 1
    %p62 = scmp.ne.s32.totalorder %s57, %s59
    %p63 = scmp.eq.s32.totalorder %s9, 0
    %p64 = por %p62, %p63
    %p65 = scmp.ne.s32.totalorder %s57, %s59
    %p66 = scmp.eq.s32.totalorder %s14, 1
    %p67 = por %p65, %p66
    %p68 = scmp.ne.s32.totalorder %s59, %s60
    %p69 = scmp.eq.s32.totalorder %s14, 0
    %p70 = por %p68, %p69
    %p71 = scmp.ne.s32.totalorder %s59, %s60
    %p72 = scmp.eq.s32.totalorder %s15, 1
    %p73 = por %p71, %p72
    %p75 = scmp.ne.s32.totalorder %s60, %s74
    %p76 = scmp.eq.s32.totalorder %s15, 0
    %p77 = por %p75, %p76
    %s79 = sadd.s32 %s78, 1
    %p82 = scmp.eq.s32.totalorder %s9, 1
    %p83 = scmp.ne.s32.totalorder %s78, %s80
    %p84 = scmp.eq.s32.totalorder %s9, 0
    %p85 = por %p83, %p84
    %p86 = scmp.ne.s32.totalorder %s78, %s80
    %p87 = scmp.eq.s32.totalorder %s14, 1
    %p88 = por %p86, %p87
    %p89 = scmp.ne.s32.totalorder %s80, %s81
    %p90 = scmp.eq.s32.totalorder %s14, 0
    %p91 = por %p89, %p90
    %p92 = scmp.ne.s32.totalorder %s80, %s81
    %p93 = scmp.eq.s32.totalorder %s15, 1
    %p94 = por %p92, %p93
    %p96 = scmp.ne.s32.totalorder %s81, %s95
    %p97 = scmp.eq.s32.totalorder %s15, 0
    %p98 = por %p96, %p97
    %s99 = ssub.s32 %s16, %s28
    %p100 = scmp.eq.s32.totalorder %s99, 0
    %s102 = sadd.s32 %s101, 1
    %s103 = scalar_select %p100, %s101, %s102
    %p106 = pneg %p100
    %p107 = scmp.eq.s32.totalorder %s9, 1
    %p108 = por %p106, %p107
    %p109 = scmp.ne.s32.totalorder %s101, %s104
    %p110 = scmp.eq.s32.totalorder %s9, 0
    %p111 = por %p109, %p110
    %p112 = scmp.ne.s32.totalorder %s101, %s104
    %p113 = scmp.eq.s32.totalorder %s14, 1
    %p114 = por %p112, %p113
    %p115 = scmp.ne.s32.totalorder %s104, %s105
    %p116 = scmp.eq.s32.totalorder %s14, 0
    %p117 = por %p115, %p116
    %p118 = scmp.ne.s32.totalorder %s104, %s105
    %p119 = scmp.eq.s32.totalorder %s15, 1
    %p120 = por %p118, %p119
    %p122 = scmp.ne.s32.totalorder %s105, %s121
    %p123 = scmp.eq.s32.totalorder %s15, 0
    %p124 = por %p122, %p123
    %p125 = scmp.le.s32.totalorder 1, %s9
    %p126 = scmp.lt.s32.totalorder %s9, 3
    %p127 = pnand %p125, %p126
    %p128 = pneg %p127
    // Predicated region
    $region9: #{tpu_custom_call.1} parent=5 // pred_check
      _
    $region10: #{tpu_custom_call.1} parent=5 // pred_check_branch
      %130 = sbr.rel (%p127) target = $region12
    $region11: #{tpu_custom_call.1} parent=5 // pred_region
      %s131 = ssub.s32 %s9, 1
      // Predicated region
      $region13: #{tpu_custom_call.1} parent=11 // pred_check
        %p132 = pneg %p70
      $region14: #{tpu_custom_call.1} parent=11 // pred_check_branch
        %134 = sbr.rel (%p132) target = $region16
      $region15: #{tpu_custom_call.1} parent=11 // pred_region
        _
      $region16: #{tpu_custom_call.1} parent=11 // pred_fallthru
        _
      // Predicated region
      $region17: #{tpu_custom_call.1} parent=11 // pred_check
        %p135 = pneg %p91
      $region18: #{tpu_custom_call.1} parent=11 // pred_check_branch
        %137 = sbr.rel (%p135) target = $region20
      $region19: #{tpu_custom_call.1} parent=11 // pred_region
        _
      $region20: #{tpu_custom_call.1} parent=11 // pred_fallthru
        _
    $region12: #{tpu_custom_call.1} parent=5 // pred_fallthru
      _
    %p138 = scmp.lt.s32.totalorder %s9, 2
    // Predicated region
    $region21: #{tpu_custom_call.1} parent=5 // pred_check
      %p139 = pneg %p138
    $region22: #{tpu_custom_call.1} parent=5 // pred_check_branch
      %141 = sbr.rel (%p139) target = $region24
    $region23: #{tpu_custom_call.1} parent=5 // pred_region
      // Predicated region
      $region25: #{tpu_custom_call.1} parent=23 // pred_check
        %p142 = pneg %p43
      $region26: #{tpu_custom_call.1} parent=23 // pred_check_branch
        %144 = sbr.rel (%p142) target = $region28
      $region27: #{tpu_custom_call.1} parent=23 // pred_region
        %p145 = scmp.lt.s32.totalorder %s16, 1
        %s146 = scalar_select %p145, %s16, 1
        %p147 = scmp.lt.s32.totalorder %s17, 0
        %s148 = scalar_select %p147, %s17, 0
        %s149 = sadd.s32 %s148, %s146
        %s150 = smul.addr %s149, 8
        %s151 = scalar_lea.vmem %s0, %s150
      $region28: #{tpu_custom_call.1} parent=23 // pred_fallthru
        _
    $region24: #{tpu_custom_call.1} parent=5 // pred_fallthru
      _
    %p152 = scmp.le.s32.totalorder 1, %s9
    %p153 = scmp.lt.s32.totalorder %s9, 3
    %p154 = pnand %p152, %p153
    %p155 = pneg %p154
    // Predicated region
    $region29: #{tpu_custom_call.1} parent=5 // pred_check
      _
    $region30: #{tpu_custom_call.1} parent=5 // pred_check_branch
      %157 = sbr.rel (%p154) target = $region32
    $region31: #{tpu_custom_call.1} parent=5 // pred_region
      %s158 = ssub.s32 %s9, 1
      %p159 = scmp.lt.s32.totalorder %s18, 1
      %s160 = scalar_select %p159, %s18, 1
      %p161 = scmp.lt.s32.totalorder %s19, 0
      %s162 = scalar_select %p161, %s19, 0
      %s163 = sadd.s32 %s162, %s160
      %s164 = smul.addr %s163, 8
      %s165 = scalar_lea.vmem %s0, %s164
      %p166 = pneg %p49
      %p167 = pneg %p46
      %p168 = pneg %p70
      %p169 = pneg %p67
      %p170 = pneg %p91
      %p171 = pneg %p88
      %p172 = pneg %p117
      %p173 = pneg %p114
      %p174 = scmp.lt.s32.totalorder %s18, 1
      %s175 = scalar_select %p174, %s18, 1
      %s176 = smul.addr %s175, 8
      %s177 = scalar_lea.vmem %s3, %s176
      %p178 = scmp.lt.s32.totalorder %s18, 1
      %s179 = scalar_select %p178, %s18, 1
      %p180 = scmp.lt.s32.totalorder %s19, 0
      %s181 = scalar_select %p180, %s19, 0
      %s182 = sadd.s32 %s181, %s179
      %s183 = smul.addr %s182, 8
      %s184 = scalar_lea.vmem %s0, %s183
      %p185 = scmp.lt.s32.totalorder %s18, 1
      %s186 = scalar_select %p185, %s18, 1
      %s187 = smul.addr %s186, 8
      %s188 = scalar_lea.vmem %s3, %s187
      %v189 = vld [vmem:[%s184] sm:$0xff]
      %vm190 = vcmask 261120
      %v191 = vsel %vm190, %v189, 0.0
      %192 = vadd.xlane.f32.xlu0 %v191
      %v193 = vpop.xlane.xlu0 %192
      %v194 = vrcp.pop 32.0
      %v195 = vmul.f32 %v193, %v194
      %v196 = vsub.f32 %v189, %v195
      %v197 = vmul.f32 %v196, %v196
      %v198 = vsel %vm190, %v197, 0.0
      %199 = vadd.xlane.f32.xlu0 %v198
      %v200 = vpop.xlane.xlu0 %199
      %v201 = vmul.f32 %v200, %v194
      %v202 = vadd.f32 %v201, 1e-05
      %v203 = vrsqrt.pop %v202
      %v204 = vmul.f32 %v196, %v203
      %v205 = vld [vmem:[%s1] sm:$0xff]
      %v206 = vld [vmem:[%s1 + $0x8] sm:$0xff]
      %v207 = vld [vmem:[%s1 + $0x10] sm:$0xff]
      %v208 = vld [vmem:[%s1 + $0x18] sm:$0xff]
      %v209 = vld [vmem:[%s2] sm:$0x1]
      %v211 = vlaneseq
      %v212 = vshrl.u32 %v211, 7
      %v213 = vsub.s32 0, %v212
      %v214 = vrot.slane %v209, %v213
      %v217 = vsel %vm190, %v204, 0
      %219 = vmatprep.subr.mxu0 0.0
      %220 = vmatpush1.msra.mxu0 0.0
      %221 = vmatprep.subr.mxu0 0.0
      %222 = vmatpush1.msra.mxu0 0.0
      %223 = vmatprep.subr.mxu0 0.0
      %224 = vmatpush1.msra.mxu0 0.0
      %225 = vmatprep.subr.mxu0 0.0
      %226 = vmatpush1.msra.mxu0 0.0
      %227 = vmatprep.subr.mxu0 0.0
      %228 = vmatpush1.msra.mxu0 0.0
      %229 = vmatprep.subr.mxu0 0.0
      %230 = vmatpush1.msra.mxu0 0.0
      %231 = vmatprep.subr.mxu0 0.0
      %232 = vmatpush1.msra.mxu0 0.0
      %233 = vmatprep.subr.mxu0 0.0
      %234 = vmatpush1.msra.mxu0 0.0
      %235 = vmatprep.subr.mxu0 0.0
      %236 = vmatpush1.msra.mxu0 0.0
      %237 = vmatprep.subr.mxu0 0.0
      %238 = vmatpush1.msra.mxu0 0.0
      %239 = vmatprep.subr.mxu0 0.0
      %240 = vmatpush1.msra.mxu0 0.0
      %241 = vmatprep.subr.mxu0 0.0
      %242 = vmatpush1.msra.mxu0 0.0
      %243 = vmatprep.subr.mxu0 0.0
      %244 = vmatpush1.msra.mxu0 %v208
      %245 = vmatprep.subr.mxu0 0.0
      %246 = vmatpush1.msra.mxu0 %v207
      %247 = vmatprep.subr.mxu0 0.0
      %248 = vmatpush1.msra.mxu0 %v206
      %249 = vmatprep.subr.mxu0 0.0
      %250 = vmatpush1.msra.mxu0 %v205
      %251 = vmatprep.subr.mxu0 0.0
      %252 = vmatpush2.msra.mxu0 0.0
      %253 = vmatprep.subr.mxu0 0.0
      %254 = vmatpush2.msra.mxu0 0.0
      %255 = vmatprep.subr.mxu0 0.0
      %256 = vmatpush2.msra.mxu0 0.0
      %257 = vmatprep.subr.mxu0 0.0
      %258 = vmatpush2.msra.mxu0 0.0
      %259 = vmatprep.subr.mxu0 0.0
      %260 = vmatpush2.msra.mxu0 0.0
      %261 = vmatprep.subr.mxu0 0.0
      %262 = vmatpush2.msra.mxu0 0.0
      %263 = vmatprep.subr.mxu0 0.0
      %264 = vmatpush2.msra.mxu0 0.0
      %265 = vmatprep.subr.mxu0 0.0
      %266 = vmatpush2.msra.mxu0 0.0
      %267 = vmatprep.subr.mxu0 0.0
      %268 = vmatpush2.msra.mxu0 0.0
      %269 = vmatprep.subr.mxu0 0.0
      %270 = vmatpush2.msra.mxu0 0.0
      %271 = vmatprep.subr.mxu0 0.0
      %272 = vmatpush2.msra.mxu0 0.0
      %273 = vmatprep.subr.mxu0 0.0
      %274 = vmatpush2.msra.mxu0 0.0
      %275 = vmatprep.subr.mxu0 0.0
      %276 = vmatpush2.msra.mxu0 0.0
      %277 = vmatprep.subr.mxu0 0.0
      %278 = vmatpush2.msra.mxu0 0.0
      %279 = vmatprep.subr.mxu0 0.0
      %280 = vmatpush2.msra.mxu0 0.0
      %281 = vmatprep.subr.mxu0 0.0
      %282 = vmatpush2.msra.mxu0 0.0
      %283 = vmatprep.mubr.f32.mxu0 0.0
      %284 = vmatmul.mubr.f32.gmra.mxu0 %v217
      %v285 = vpop.f32.mrf.mxu0
      %v286 = vadd.f32 %v214, %v285
      %v287 = vpop.f32.mrf.mxu0
      %288 = vdwg.mxu0
      %vm289 = vcmask 31744
      %v290 = vsel %vm289, %v286, -inf
      %v291 = vrot.slane %v290, 4
      %v292 = vmax.f32 %v290, %v291
      %v293 = vrot.slane %v292, 2
      %v294 = vmax.f32 %v292, %v293
      %v295 = vrot.slane %v294, 1
      %v296 = vmax.f32 %v294, %v295
      %p297 = scmp.eq.s32.totalorder %s19, 0
      // Predicated region
      $region33: #{tpu_custom_call.1} parent=31 // pred_check
        %p298 = pneg %p297
      $region34: #{tpu_custom_call.1} parent=31 // pred_check_branch
        %300 = sbr.rel (%p298) target = $region36
      $region35: #{tpu_custom_call.1} parent=31 // pred_region
        %vm301 = vcmask 24576
        %302 = vst.msk [vmem:[#allocation2] sm:$0x1] %vm301, -inf
        %303 = vst.msk [vmem:[#allocation3] sm:$0x1] %vm301, 0.0
      $region36: #{tpu_custom_call.1} parent=31 // pred_fallthru
        _
      %v304 = vld [vmem:[#allocation2] sm:$0x1]
      %v305 = vmax.f32 %v304, %v296
      %v307 = vlaneseq
      %v308 = vshrl.u32 %v307, 7
      %v309 = vsub.s32 0, %v308
      %v310 = vrot.slane %v305, %v309
      %v312 = vsub.f32 %v286, %v310
      %v313 = vmul.f32 %v312, 1.442695
      %v314 = vpow.pop %v313
      %v315 = vld [vmem:[#allocation3] sm:$0x1]
      %v316 = vsub.f32 %v304, %v305
      %v317 = vmul.f32 %v316, 1.442695
      %v318 = vpow.pop %v317
      %v319 = vmul.f32 %v315, %v318
      %v320 = vsel %vm289, %v314, 0.0
      %v321 = vrot.slane %v320, 4
      %v322 = vadd.f32 %v320, %v321
      %v323 = vrot.slane %v322, 2
      %v324 = vadd.f32 %v322, %v323
      %v325 = vrot.slane %v324, 1
      %v326 = vadd.f32 %v324, %v325
      %v327 = vadd.f32 %v319, %v326
      %vm328 = vcmask 24576
      %329 = vst.msk [vmem:[#allocation3] sm:$0x1] %vm328, %v327
      %330 = vst.msk [vmem:[#allocation2] sm:$0x1] %vm328, %v305
      %s331 = scalar_lea.vmem [#allocation4], %s19
      %332 = vst.msk [vmem:[%s331] sm:$0x1] %vm328, %v305
      %s333 = smul.u32 %s19, 8
      %s334 = scalar_lea.vmem %s188, %s333
      %335 = vst.msk [vmem:[%s334] sm:$0xff] %vm289, %v314
      // Predicated region
      $region37: #{tpu_custom_call.1} parent=31 // pred_check
        %p336 = pneg %p297
      $region38: #{tpu_custom_call.1} parent=31 // pred_check_branch
        %338 = sbr.rel (%p336) target = $region40
      $region39: #{tpu_custom_call.1} parent=31 // pred_region
        %v339 = vld [vmem:[#allocation3] sm:$0x1]
        %v340 = vrcp.pop %v339
        %v341 = vmul.f32 %v339, %v340
        %v342 = vsub.f32 2.0, %v341
        %v343 = vmul.f32 %v340, %v342
        %v344 = vld [vmem:[#allocation4] sm:$0x1]
        %v345 = vld [vmem:[#allocation2] sm:$0x1]
        %v346 = vsub.f32 %v344, %v345
        %v347 = vmul.f32 %v346, 1.442695
        %v348 = vpow.pop %v347
        %v349 = vmul.f32 %v348, %v343
        %v350 = vld [vmem:[%s188] sm:$0xff]
        %v352 = vlaneseq
        %v353 = vshrl.u32 %v352, 7
        %v354 = vsub.s32 0, %v353
        %v355 = vrot.slane %v349, %v354
        %v357 = vmul.f32 %v350, %v355
        %358 = vst.msk [vmem:[%s188] sm:$0xff] %vm289, %v357
      $region40: #{tpu_custom_call.1} parent=31 // pred_fallthru
        _
      %p359 = scmp.lt.s32.totalorder %s18, 1
      %s360 = scalar_select %p359, %s18, 1
      %s361 = smul.addr %s360, 8
      %s362 = scalar_lea.vmem %s3, %s361
      // Predicated region
      $region41: #{tpu_custom_call.1} parent=31 // pred_check
        %p363 = pneg %p114
      $region42: #{tpu_custom_call.1} parent=31 // pred_check_branch
        %365 = sbr.rel (%p363) target = $region44
      $region43: #{tpu_custom_call.1} parent=31 // pred_region
        _
      $region44: #{tpu_custom_call.1} parent=31 // pred_fallthru
        _
    $region32: #{tpu_custom_call.1} parent=5 // pred_fallthru
      _
    %p366 = scmp.le.s32.totalorder 2, %s9
    // Predicated region
    $region45: #{tpu_custom_call.1} parent=5 // pred_check
      %p367 = pneg %p366
    $region46: #{tpu_custom_call.1} parent=5 // pred_check_branch
      %369 = sbr.rel (%p367) target = $region48
    $region47: #{tpu_custom_call.1} parent=5 // pred_region
      %s370 = ssub.s32 %s9, 2
      // Predicated region
      $region49: #{tpu_custom_call.1} parent=47 // pred_check
        %p371 = pneg %p120
      $region50: #{tpu_custom_call.1} parent=47 // pred_check_branch
        %373 = sbr.rel (%p371) target = $region52
      $region51: #{tpu_custom_call.1} parent=47 // pred_region
        %p374 = scmp.lt.s32.totalorder %s20, 1
        %s375 = scalar_select %p374, %s20, 1
        %s376 = smul.addr %s375, 8
        %s377 = scalar_lea.vmem %s3, %s376
      $region52: #{tpu_custom_call.1} parent=47 // pred_fallthru
        _
    $region48: #{tpu_custom_call.1} parent=5 // pred_fallthru
      _
  $region6: #{tpu_custom_call.1} parent=0 // loop_footer
    %s13 = sadd.s32 1, %s9
  $region7: #{tpu_custom_call.1} parent=0 // loop_footer_branch
    %8 = sbr.rel target = $region3
  $region8: #{tpu_custom_call.1} parent=0 // loop_exit
    _

</llo_original>
